<compile_context>
chip_gen: v6e
topology: v6e:2x2x1
jax: 0.10.0
libtpu: 0.0.40
codegen_flags: <defaults>
</compile_context>

<pallas_src>
import numpy as np
import jax
import jax.numpy as jnp
from jax.experimental import pallas as pl
from jax.experimental.pallas import tpu as pltpu


# ---------------------------------------------------------------------------
# Fused Pallas kernel: layer-0 dilated LSTM recurrence + linear readout
# ---------------------------------------------------------------------------
def make_drnn48_kernel(T, B, H, d0):
    eb = d0 * B                    # effective (phase-folded) batch of layer 0
    n_steps = T // d0

    def kernel(x_ref, w_ih_ref, w_hh_ref, b_ref, lin_w_ref, lin_b_ref, out_ref):
        # Hoisted input projection: one (T*B, Din) @ (Din, 4H) matmul off the
        # serial critical path.  With the zalando fold ordering (phase j of
        # dilated step k is time k*d0 + j) the fold is the IDENTITY on the flat
        # row-major (T*B, feat) layout, so the recurrence just walks this buffer
        # in chunks of eb rows.
        gates_x = jnp.dot(x_ref[...], w_ih_ref[...],
                          preferred_element_type=jnp.float32) + b_ref[...]
        w_hh = w_hh_ref[...]

        # One-pass gate activation constants (hoisted; JAX doesn't CSE broadcasts):
        # sigmoid(x) = 0.5 * (1 + tanh(x / 2)) on the i/f/o lanes, native tanh on
        # the g lanes -> a single full-width tanh EUP pass per step.
        lane = jax.lax.broadcasted_iota(jnp.int32, (eb, 4 * H), 1)
        is_g = jnp.logical_and(lane >= 2 * H, lane < 3 * H)
        pre = jnp.where(is_g, 1.0, 0.5).astype(jnp.float32)   # pre & post scale
        off = jnp.where(is_g, 0.0, 0.5).astype(jnp.float32)   # post offset

        h = jnp.zeros((eb, H), jnp.float32)
        c = jnp.zeros((eb, H), jnp.float32)

        # TODO(synk): W_hh could be held weight-stationary in the MXU via
        # pltpu.matmul_push_rhs / matmul_acc_lhs / matmul_pop to drop the per-step
        # RHS push; kept as jnp.dot for lowering robustness at only 8 serial steps.
        for k in range(n_steps):            # fully unrolled, static slices only
            g = gates_x[k * eb:(k + 1) * eb, :]
            if k > 0:                        # h == 0 at k == 0: skip dead matmul
                g = g + jnp.dot(h, w_hh, preferred_element_type=jnp.float32)
            t = jnp.tanh(g * pre)            # ONE EUP pass over all 4H lanes
            act = pre * t + off              # i/f/o -> sigmoid, g -> tanh
            # PyTorch LSTM gate order: i, f, g, o
            i_g = act[:, 0 * H:1 * H]
            f_g = act[:, 1 * H:2 * H]
            g_g = act[:, 2 * H:3 * H]
            o_g = act[:, 3 * H:4 * H]
            c = i_g * g_g if k == 0 else f_g * c + i_g * g_g
            h = o_g * jnp.tanh(c)

        # hidden[0][-1] of the PyTorch module == layer-0 output at time T-1,
        # i.e. the last B rows (phase d0-1) of the final dilated-step hidden.
        out_ref[...] = (jnp.dot(h[eb - B:, :], lin_w_ref[...],
                                preferred_element_type=jnp.float32)
                        + lin_b_ref[...])

    return kernel


def drnn_48_forward_pallas(x, layer_params, dilations, lin_w_t, lin_b):
    """x: (T, B, Din); layer_params[l] = (w_ih_t (Din_l,4H), w_hh_t (H,4H), bias (1,4H));
    lin_w_t: (H, O); lin_b: (1, O).  Returns (B, O).

    Only layer 0 is computed: the module's readout is linear(hidden[0][-1]), so the
    deeper dilated layers are dead code w.r.t. the returned value (see reference)."""
    T, B, Din = x.shape
    w_ih_t, w_hh_t, bias = layer_params[0]
    H = w_hh_t.shape[0]
    O = lin_w_t.shape[1]
    d0 = int(dilations[0])
    # TODO(synk): zero-pad the time axis when T % d0 != 0 (not needed for the
    # default dilations [1, 2, 4] with T = 8, where d0 == 1).
    assert T % d0 == 0, "kernel assumes T divisible by the layer-0 dilation"

    x_flat = x.reshape(T * B, Din)   # flat time-major rows: row t*B + b == x[t, b]

    vmem = pl.BlockSpec(memory_space=pltpu.MemorySpace.VMEM)
    n_steps = T // d0
    cost = pl.CostEstimate(
        flops=(2 * T * B * Din * 4 * H                     # hoisted input projection
               + 2 * (n_steps - 1) * d0 * B * H * 4 * H    # recurrent matmuls
               + 2 * B * H * O                             # linear readout
               + 12 * T * B * 4 * H),                      # gate VPU math
        transcendentals=n_steps * d0 * B * (4 * H + H),    # fused gate tanh + tanh(c)
        bytes_accessed=4 * (T * B * Din + Din * 4 * H + H * 4 * H + 4 * H
                            + H * O + O + B * O),
    )

    return pl.pallas_call(
        make_drnn48_kernel(T, B, H, d0),
        out_shape=jax.ShapeDtypeStruct((B, O), jnp.float32),
        in_specs=[vmem] * 6,
        out_specs=vmem,
        cost_estimate=cost,
    )(x_flat, w_ih_t, w_hh_t, bias, lin_w_t, lin_b)


# ---------------------------------------------------------------------------
# Pure-JAX reference (faithful zalando concat-based fold/unfold over ALL layers,
# readout from layer 0's tail) — also validates the dead-layer elimination.
# ---------------------------------------------------------------------------
def _lstm_layer_ref(x_seq, w_ih_t, w_hh_t, bias):
    H = w_hh_t.shape[0]
    B = x_seq.shape[1]

    def step(carry, x_t):
        h, c = carry
        gates = x_t @ w_ih_t + h @ w_hh_t + bias[0]
        i = jax.nn.sigmoid(gates[:, :H])
        f = jax.nn.sigmoid(gates[:, H:2 * H])
        g = jnp.tanh(gates[:, 2 * H:3 * H])
        o = jax.nn.sigmoid(gates[:, 3 * H:])
        c = f * c + i * g
        h = o * jnp.tanh(c)
        return (h, c), h

    init = (jnp.zeros((B, H), jnp.float32), jnp.zeros((B, H), jnp.float32))
    _, ys = jax.lax.scan(step, init, x_seq)
    return ys


def drnn_48_forward_ref(x, layer_params, dilations, lin_w_t, lin_b):
    inputs = x
    tails = []
    for (w_ih_t, w_hh_t, bias), d in zip(layer_params, dilations):
        T, B, Din = inputs.shape
        pad = (-T) % d
        inputs_p = inputs
        if pad:
            inputs_p = jnp.concatenate(
                [inputs, jnp.zeros((pad, B, Din), inputs.dtype)], axis=0)
        Tp = inputs_p.shape[0]
        # zalando fold: phase-j batches, time k*d + j
        dil_in = jnp.concatenate([inputs_p[j::d] for j in range(d)], axis=1)
        dil_out = _lstm_layer_ref(dil_in, w_ih_t, w_hh_t, bias)       # (Tp//d, d*B, H)
        blocks = jnp.split(dil_out, d, axis=1)
        out = jnp.stack(blocks, axis=1).reshape(Tp, B, -1)[:T]
        tails.append(out[-d:])
        inputs = out
    h_out = tails[0][-1]                     # layer-0 output at the last time step
    # TODO(synk): original does h_out[:, -x.size(0):, :].view(-1, H); that 3-D slice
    # presumes a repo-specific drnn return shape; with (B, H) it reduces to a reshape.
    linear_in = h_out.reshape(-1, h_out.shape[-1])
    return linear_in @ lin_w_t + lin_b


# ---------------------------------------------------------------------------
if __name__ == "__main__":
    output_size = 6
    input_size = 4
    batch_size = 2
    hidden_size = 32
    num_layers = 3
    seq_len = 8
    dilations = [2 ** i for i in range(num_layers)]   # default DRNN dilations

    key = jax.random.PRNGKey(0)
    kx, kp = jax.random.split(key)
    x = jax.random.normal(kx, (seq_len, batch_size, input_size), dtype=jnp.float32)

    # Deterministic parameter init (PyTorch-style U(-1/sqrt(H), 1/sqrt(H))).
    bound = 1.0 / np.sqrt(hidden_size)
    layer_params = []
    k = kp
    for li in range(num_layers):
        din = input_size if li == 0 else hidden_size
        k, k1, k2, k3, k4 = jax.random.split(k, 5)
        w_ih = jax.random.uniform(k1, (4 * hidden_size, din),
                                  minval=-bound, maxval=bound, dtype=jnp.float32)
        w_hh = jax.random.uniform(k2, (4 * hidden_size, hidden_size),
                                  minval=-bound, maxval=bound, dtype=jnp.float32)
        b_ih = jax.random.uniform(k3, (4 * hidden_size,),
                                  minval=-bound, maxval=bound, dtype=jnp.float32)
        b_hh = jax.random.uniform(k4, (4 * hidden_size,),
                                  minval=-bound, maxval=bound, dtype=jnp.float32)
        layer_params.append((w_ih.T, w_hh.T, (b_ih + b_hh)[None, :]))

    k, k1, k2 = jax.random.split(k, 3)
    lin_w = jax.random.uniform(k1, (output_size, hidden_size),
                               minval=-bound, maxval=bound, dtype=jnp.float32)
    lin_b = jax.random.uniform(k2, (output_size,),
                               minval=-bound, maxval=bound, dtype=jnp.float32)

    fused_fwd = jax.jit(
        lambda x_, params_, lw, lb: drnn_48_forward_pallas(x_, params_, dilations, lw, lb))
    out = jax.block_until_ready(fused_fwd(x, layer_params, lin_w.T, lin_b[None, :]))

    ref = jax.block_until_ready(
        drnn_48_forward_ref(x, layer_params, dilations, lin_w.T, lin_b[None, :]))

    assert out.shape == (batch_size, output_size)
    np.testing.assert_allclose(np.asarray(out), np.asarray(ref), rtol=1e-3, atol=1e-3)
    print("KERNEL_OK")
</pallas_src>

<mosaic_0001>
module attributes {stable_mosaic.version = 11 : i64} {
  func.func @kernel(%arg0: memref<16x4xf32, #tpu.memory_space<vmem>>, %arg1: memref<4x128xf32, #tpu.memory_space<vmem>>, %arg2: memref<32x128xf32, #tpu.memory_space<vmem>>, %arg3: memref<1x128xf32, #tpu.memory_space<vmem>>, %arg4: memref<32x6xf32, #tpu.memory_space<vmem>>, %arg5: memref<1x6xf32, #tpu.memory_space<vmem>>, %arg6: memref<2x6xf32, #tpu.memory_space<vmem>>) attributes {dimension_semantics = [], scalar_prefetch = 0 : i64, scratch_operands = 0 : i64, tpu.core_type = #tpu.core_type<tc>} {
    %c0 = arith.constant 0 : index
    %c0_0 = arith.constant 0 : index
    %0 = vector.load %arg0[%c0, %c0_0] : memref<16x4xf32, #tpu.memory_space<vmem>>, vector<16x4xf32>
    %c0_1 = arith.constant 0 : index
    %c0_2 = arith.constant 0 : index
    %1 = vector.load %arg1[%c0_1, %c0_2] : memref<4x128xf32, #tpu.memory_space<vmem>>, vector<4x128xf32>
    %cst = arith.constant dense<0.000000e+00> : vector<16x128xf32>
    %2 = tpu.matmul %0, %1, %cst {dimension_numbers = #tpu.dot_dimension_numbers<[1], [0], [0], [1], [0, 0, 1, 1], [], []>} : vector<16x4xf32>, vector<4x128xf32>, vector<16x128xf32> -> vector<16x128xf32>
    %c0_3 = arith.constant 0 : index
    %c0_4 = arith.constant 0 : index
    %3 = vector.load %arg3[%c0_3, %c0_4] : memref<1x128xf32, #tpu.memory_space<vmem>>, vector<1x128xf32>
    %4 = vector.broadcast %3 : vector<1x128xf32> to vector<16x128xf32>
    %5 = arith.addf %2, %4 : vector<16x128xf32>
    %c0_5 = arith.constant 0 : index
    %c0_6 = arith.constant 0 : index
    %6 = vector.load %arg2[%c0_5, %c0_6] : memref<32x128xf32, #tpu.memory_space<vmem>>, vector<32x128xf32>
    %7 = tpu.iota {dimensions = array<i32: 1>} : vector<2x128xi32>
    %c64_i32 = arith.constant 64 : i32
    %8 = vector.broadcast %c64_i32 : i32 to vector<2x128xi32>
    %9 = arith.cmpi sge, %7, %8 : vector<2x128xi32>
    %c96_i32 = arith.constant 96 : i32
    %10 = vector.broadcast %c96_i32 : i32 to vector<2x128xi32>
    %11 = arith.cmpi slt, %7, %10 : vector<2x128xi32>
    %12 = arith.andi %9, %11 : vector<2x128xi1>
    %cst_7 = arith.constant 1.000000e+00 : f32
    %cst_8 = arith.constant 5.000000e-01 : f32
    %13 = vector.broadcast %cst_7 : f32 to vector<2x128xf32>
    %14 = vector.broadcast %cst_8 : f32 to vector<2x128xf32>
    %15 = arith.select %12, %13, %14 : vector<2x128xi1>, vector<2x128xf32>
    %cst_9 = arith.constant 0.000000e+00 : f32
    %cst_10 = arith.constant 5.000000e-01 : f32
    %16 = vector.broadcast %cst_9 : f32 to vector<2x128xf32>
    %17 = vector.broadcast %cst_10 : f32 to vector<2x128xf32>
    %18 = arith.select %12, %16, %17 : vector<2x128xi1>, vector<2x128xf32>
    %19 = vector.extract_strided_slice %5 {offsets = [0, 0], sizes = [2, 128], strides = [1, 1]} : vector<16x128xf32> to vector<2x128xf32>
    %20 = arith.mulf %19, %15 : vector<2x128xf32>
    %21 = math.tanh %20 : vector<2x128xf32>
    %22 = arith.mulf %15, %21 : vector<2x128xf32>
    %23 = arith.addf %22, %18 : vector<2x128xf32>
    %24 = vector.extract_strided_slice %23 {offsets = [0, 0], sizes = [2, 32], strides = [1, 1]} : vector<2x128xf32> to vector<2x32xf32>
    %25 = vector.extract_strided_slice %23 {offsets = [0, 64], sizes = [2, 32], strides = [1, 1]} : vector<2x128xf32> to vector<2x32xf32>
    %26 = vector.extract_strided_slice %23 {offsets = [0, 96], sizes = [2, 32], strides = [1, 1]} : vector<2x128xf32> to vector<2x32xf32>
    %27 = arith.mulf %24, %25 : vector<2x32xf32>
    %28 = math.tanh %27 : vector<2x32xf32>
    %29 = arith.mulf %26, %28 : vector<2x32xf32>
    %30 = vector.extract_strided_slice %5 {offsets = [2, 0], sizes = [2, 128], strides = [1, 1]} : vector<16x128xf32> to vector<2x128xf32>
    %cst_11 = arith.constant dense<0.000000e+00> : vector<2x128xf32>
    %31 = tpu.matmul %29, %6, %cst_11 {dimension_numbers = #tpu.dot_dimension_numbers<[1], [0], [0], [1], [0, 0, 1, 1], [], []>} : vector<2x32xf32>, vector<32x128xf32>, vector<2x128xf32> -> vector<2x128xf32>
    %32 = arith.addf %30, %31 : vector<2x128xf32>
    %33 = arith.mulf %32, %15 : vector<2x128xf32>
    %34 = math.tanh %33 : vector<2x128xf32>
    %35 = arith.mulf %15, %34 : vector<2x128xf32>
    %36 = arith.addf %35, %18 : vector<2x128xf32>
    %37 = vector.extract_strided_slice %36 {offsets = [0, 0], sizes = [2, 32], strides = [1, 1]} : vector<2x128xf32> to vector<2x32xf32>
    %38 = vector.extract_strided_slice %36 {offsets = [0, 32], sizes = [2, 32], strides = [1, 1]} : vector<2x128xf32> to vector<2x32xf32>
    %39 = vector.extract_strided_slice %36 {offsets = [0, 64], sizes = [2, 32], strides = [1, 1]} : vector<2x128xf32> to vector<2x32xf32>
    %40 = vector.extract_strided_slice %36 {offsets = [0, 96], sizes = [2, 32], strides = [1, 1]} : vector<2x128xf32> to vector<2x32xf32>
    %41 = arith.mulf %38, %27 : vector<2x32xf32>
    %42 = arith.mulf %37, %39 : vector<2x32xf32>
    %43 = arith.addf %41, %42 : vector<2x32xf32>
    %44 = math.tanh %43 : vector<2x32xf32>
    %45 = arith.mulf %40, %44 : vector<2x32xf32>
    %46 = vector.extract_strided_slice %5 {offsets = [4, 0], sizes = [2, 128], strides = [1, 1]} : vector<16x128xf32> to vector<2x128xf32>
    %cst_12 = arith.constant dense<0.000000e+00> : vector<2x128xf32>
    %47 = tpu.matmul %45, %6, %cst_12 {dimension_numbers = #tpu.dot_dimension_numbers<[1], [0], [0], [1], [0, 0, 1, 1], [], []>} : vector<2x32xf32>, vector<32x128xf32>, vector<2x128xf32> -> vector<2x128xf32>
    %48 = arith.addf %46, %47 : vector<2x128xf32>
    %49 = arith.mulf %48, %15 : vector<2x128xf32>
    %50 = math.tanh %49 : vector<2x128xf32>
    %51 = arith.mulf %15, %50 : vector<2x128xf32>
    %52 = arith.addf %51, %18 : vector<2x128xf32>
    %53 = vector.extract_strided_slice %52 {offsets = [0, 0], sizes = [2, 32], strides = [1, 1]} : vector<2x128xf32> to vector<2x32xf32>
    %54 = vector.extract_strided_slice %52 {offsets = [0, 32], sizes = [2, 32], strides = [1, 1]} : vector<2x128xf32> to vector<2x32xf32>
    %55 = vector.extract_strided_slice %52 {offsets = [0, 64], sizes = [2, 32], strides = [1, 1]} : vector<2x128xf32> to vector<2x32xf32>
    %56 = vector.extract_strided_slice %52 {offsets = [0, 96], sizes = [2, 32], strides = [1, 1]} : vector<2x128xf32> to vector<2x32xf32>
    %57 = arith.mulf %54, %43 : vector<2x32xf32>
    %58 = arith.mulf %53, %55 : vector<2x32xf32>
    %59 = arith.addf %57, %58 : vector<2x32xf32>
    %60 = math.tanh %59 : vector<2x32xf32>
    %61 = arith.mulf %56, %60 : vector<2x32xf32>
    %62 = vector.extract_strided_slice %5 {offsets = [6, 0], sizes = [2, 128], strides = [1, 1]} : vector<16x128xf32> to vector<2x128xf32>
    %cst_13 = arith.constant dense<0.000000e+00> : vector<2x128xf32>
    %63 = tpu.matmul %61, %6, %cst_13 {dimension_numbers = #tpu.dot_dimension_numbers<[1], [0], [0], [1], [0, 0, 1, 1], [], []>} : vector<2x32xf32>, vector<32x128xf32>, vector<2x128xf32> -> vector<2x128xf32>
    %64 = arith.addf %62, %63 : vector<2x128xf32>
    %65 = arith.mulf %64, %15 : vector<2x128xf32>
    %66 = math.tanh %65 : vector<2x128xf32>
    %67 = arith.mulf %15, %66 : vector<2x128xf32>
    %68 = arith.addf %67, %18 : vector<2x128xf32>
    %69 = vector.extract_strided_slice %68 {offsets = [0, 0], sizes = [2, 32], strides = [1, 1]} : vector<2x128xf32> to vector<2x32xf32>
    %70 = vector.extract_strided_slice %68 {offsets = [0, 32], sizes = [2, 32], strides = [1, 1]} : vector<2x128xf32> to vector<2x32xf32>
    %71 = vector.extract_strided_slice %68 {offsets = [0, 64], sizes = [2, 32], strides = [1, 1]} : vector<2x128xf32> to vector<2x32xf32>
    %72 = vector.extract_strided_slice %68 {offsets = [0, 96], sizes = [2, 32], strides = [1, 1]} : vector<2x128xf32> to vector<2x32xf32>
    %73 = arith.mulf %70, %59 : vector<2x32xf32>
    %74 = arith.mulf %69, %71 : vector<2x32xf32>
    %75 = arith.addf %73, %74 : vector<2x32xf32>
    %76 = math.tanh %75 : vector<2x32xf32>
    %77 = arith.mulf %72, %76 : vector<2x32xf32>
    %78 = vector.extract_strided_slice %5 {offsets = [8, 0], sizes = [2, 128], strides = [1, 1]} : vector<16x128xf32> to vector<2x128xf32>
    %cst_14 = arith.constant dense<0.000000e+00> : vector<2x128xf32>
    %79 = tpu.matmul %77, %6, %cst_14 {dimension_numbers = #tpu.dot_dimension_numbers<[1], [0], [0], [1], [0, 0, 1, 1], [], []>} : vector<2x32xf32>, vector<32x128xf32>, vector<2x128xf32> -> vector<2x128xf32>
    %80 = arith.addf %78, %79 : vector<2x128xf32>
    %81 = arith.mulf %80, %15 : vector<2x128xf32>
    %82 = math.tanh %81 : vector<2x128xf32>
    %83 = arith.mulf %15, %82 : vector<2x128xf32>
    %84 = arith.addf %83, %18 : vector<2x128xf32>
    %85 = vector.extract_strided_slice %84 {offsets = [0, 0], sizes = [2, 32], strides = [1, 1]} : vector<2x128xf32> to vector<2x32xf32>
    %86 = vector.extract_strided_slice %84 {offsets = [0, 32], sizes = [2, 32], strides = [1, 1]} : vector<2x128xf32> to vector<2x32xf32>
    %87 = vector.extract_strided_slice %84 {offsets = [0, 64], sizes = [2, 32], strides = [1, 1]} : vector<2x128xf32> to vector<2x32xf32>
    %88 = vector.extract_strided_slice %84 {offsets = [0, 96], sizes = [2, 32], strides = [1, 1]} : vector<2x128xf32> to vector<2x32xf32>
    %89 = arith.mulf %86, %75 : vector<2x32xf32>
    %90 = arith.mulf %85, %87 : vector<2x32xf32>
    %91 = arith.addf %89, %90 : vector<2x32xf32>
    %92 = math.tanh %91 : vector<2x32xf32>
    %93 = arith.mulf %88, %92 : vector<2x32xf32>
    %94 = vector.extract_strided_slice %5 {offsets = [10, 0], sizes = [2, 128], strides = [1, 1]} : vector<16x128xf32> to vector<2x128xf32>
    %cst_15 = arith.constant dense<0.000000e+00> : vector<2x128xf32>
    %95 = tpu.matmul %93, %6, %cst_15 {dimension_numbers = #tpu.dot_dimension_numbers<[1], [0], [0], [1], [0, 0, 1, 1], [], []>} : vector<2x32xf32>, vector<32x128xf32>, vector<2x128xf32> -> vector<2x128xf32>
    %96 = arith.addf %94, %95 : vector<2x128xf32>
    %97 = arith.mulf %96, %15 : vector<2x128xf32>
    %98 = math.tanh %97 : vector<2x128xf32>
    %99 = arith.mulf %15, %98 : vector<2x128xf32>
    %100 = arith.addf %99, %18 : vector<2x128xf32>
    %101 = vector.extract_strided_slice %100 {offsets = [0, 0], sizes = [2, 32], strides = [1, 1]} : vector<2x128xf32> to vector<2x32xf32>
    %102 = vector.extract_strided_slice %100 {offsets = [0, 32], sizes = [2, 32], strides = [1, 1]} : vector<2x128xf32> to vector<2x32xf32>
    %103 = vector.extract_strided_slice %100 {offsets = [0, 64], sizes = [2, 32], strides = [1, 1]} : vector<2x128xf32> to vector<2x32xf32>
    %104 = vector.extract_strided_slice %100 {offsets = [0, 96], sizes = [2, 32], strides = [1, 1]} : vector<2x128xf32> to vector<2x32xf32>
    %105 = arith.mulf %102, %91 : vector<2x32xf32>
    %106 = arith.mulf %101, %103 : vector<2x32xf32>
    %107 = arith.addf %105, %106 : vector<2x32xf32>
    %108 = math.tanh %107 : vector<2x32xf32>
    %109 = arith.mulf %104, %108 : vector<2x32xf32>
    %110 = vector.extract_strided_slice %5 {offsets = [12, 0], sizes = [2, 128], strides = [1, 1]} : vector<16x128xf32> to vector<2x128xf32>
    %cst_16 = arith.constant dense<0.000000e+00> : vector<2x128xf32>
    %111 = tpu.matmul %109, %6, %cst_16 {dimension_numbers = #tpu.dot_dimension_numbers<[1], [0], [0], [1], [0, 0, 1, 1], [], []>} : vector<2x32xf32>, vector<32x128xf32>, vector<2x128xf32> -> vector<2x128xf32>
    %112 = arith.addf %110, %111 : vector<2x128xf32>
    %113 = arith.mulf %112, %15 : vector<2x128xf32>
    %114 = math.tanh %113 : vector<2x128xf32>
    %115 = arith.mulf %15, %114 : vector<2x128xf32>
    %116 = arith.addf %115, %18 : vector<2x128xf32>
    %117 = vector.extract_strided_slice %116 {offsets = [0, 0], sizes = [2, 32], strides = [1, 1]} : vector<2x128xf32> to vector<2x32xf32>
    %118 = vector.extract_strided_slice %116 {offsets = [0, 32], sizes = [2, 32], strides = [1, 1]} : vector<2x128xf32> to vector<2x32xf32>
    %119 = vector.extract_strided_slice %116 {offsets = [0, 64], sizes = [2, 32], strides = [1, 1]} : vector<2x128xf32> to vector<2x32xf32>
    %120 = vector.extract_strided_slice %116 {offsets = [0, 96], sizes = [2, 32], strides = [1, 1]} : vector<2x128xf32> to vector<2x32xf32>
    %121 = arith.mulf %118, %107 : vector<2x32xf32>
    %122 = arith.mulf %117, %119 : vector<2x32xf32>
    %123 = arith.addf %121, %122 : vector<2x32xf32>
    %124 = math.tanh %123 : vector<2x32xf32>
    %125 = arith.mulf %120, %124 : vector<2x32xf32>
    %126 = vector.extract_strided_slice %5 {offsets = [14, 0], sizes = [2, 128], strides = [1, 1]} : vector<16x128xf32> to vector<2x128xf32>
    %cst_17 = arith.constant dense<0.000000e+00> : vector<2x128xf32>
    %127 = tpu.matmul %125, %6, %cst_17 {dimension_numbers = #tpu.dot_dimension_numbers<[1], [0], [0], [1], [0, 0, 1, 1], [], []>} : vector<2x32xf32>, vector<32x128xf32>, vector<2x128xf32> -> vector<2x128xf32>
    %128 = arith.addf %126, %127 : vector<2x128xf32>
    %129 = arith.mulf %128, %15 : vector<2x128xf32>
    %130 = math.tanh %129 : vector<2x128xf32>
    %131 = arith.mulf %15, %130 : vector<2x128xf32>
    %132 = arith.addf %131, %18 : vector<2x128xf32>
    %133 = vector.extract_strided_slice %132 {offsets = [0, 0], sizes = [2, 32], strides = [1, 1]} : vector<2x128xf32> to vector<2x32xf32>
    %134 = vector.extract_strided_slice %132 {offsets = [0, 32], sizes = [2, 32], strides = [1, 1]} : vector<2x128xf32> to vector<2x32xf32>
    %135 = vector.extract_strided_slice %132 {offsets = [0, 64], sizes = [2, 32], strides = [1, 1]} : vector<2x128xf32> to vector<2x32xf32>
    %136 = vector.extract_strided_slice %132 {offsets = [0, 96], sizes = [2, 32], strides = [1, 1]} : vector<2x128xf32> to vector<2x32xf32>
    %137 = arith.mulf %134, %123 : vector<2x32xf32>
    %138 = arith.mulf %133, %135 : vector<2x32xf32>
    %139 = arith.addf %137, %138 : vector<2x32xf32>
    %140 = math.tanh %139 : vector<2x32xf32>
    %141 = arith.mulf %136, %140 : vector<2x32xf32>
    %c0_18 = arith.constant 0 : index
    %c0_19 = arith.constant 0 : index
    %142 = vector.load %arg4[%c0_18, %c0_19] : memref<32x6xf32, #tpu.memory_space<vmem>>, vector<32x6xf32>
    %cst_20 = arith.constant dense<0.000000e+00> : vector<2x6xf32>
    %143 = tpu.matmul %141, %142, %cst_20 {dimension_numbers = #tpu.dot_dimension_numbers<[1], [0], [0], [1], [0, 0, 1, 1], [], []>} : vector<2x32xf32>, vector<32x6xf32>, vector<2x6xf32> -> vector<2x6xf32>
    %c0_21 = arith.constant 0 : index
    %c0_22 = arith.constant 0 : index
    %144 = vector.load %arg5[%c0_21, %c0_22] : memref<1x6xf32, #tpu.memory_space<vmem>>, vector<1x6xf32>
    %145 = vector.broadcast %144 : vector<1x6xf32> to vector<2x6xf32>
    %146 = arith.addf %143, %145 : vector<2x6xf32>
    %c0_23 = arith.constant 0 : index
    %c0_24 = arith.constant 0 : index
    %147 = vector.load %arg6[%c0_23, %c0_24] : memref<2x6xf32, #tpu.memory_space<vmem>>, vector<2x6xf32>
    tpu.vector_store %arg6[%c0_23, %c0_24], %146 {strides = array<i32>} : memref<2x6xf32, #tpu.memory_space<vmem>>, vector<2x6xf32>,
    return
  }
}

</mosaic_0001>

<llo_original>
// kernel: _lambda_.1
$region0: #{_lambda_.1}
  #allocation0 [shape = 'u32[]', space=smem, size = 0x4, offset = 0x4, fixed_abs, tag = 'smem constant byte address 0x4 - core index']
  #allocation1 [shape = 'u32[144,128]{1,0:T(1,128)}', space=vmem, size = 0x12000, scoped, tag = 'internal scratch']
  %s0 = inlined_call_operand.vmem [shape: f32[16,4], index: 0, kind: input, shape index: {}]
  %s1 = inlined_call_operand.vmem [shape: f32[4,128], index: 1, kind: input, shape index: {}]
  %s2 = inlined_call_operand.vmem [shape: f32[32,128], index: 2, kind: input, shape index: {}]
  %s3 = inlined_call_operand.vmem [shape: f32[1,128], index: 3, kind: input, shape index: {}]
  %s4 = inlined_call_operand.vmem [shape: f32[32,6], index: 4, kind: input, shape index: {}]
  %s5 = inlined_call_operand.vmem [shape: f32[1,6], index: 5, kind: input, shape index: {}]
  %s6 = inlined_call_operand.hbm [shape: f32[2,6], index: 6, kind: output, shape index: {}]
  %s7 = sld [smem:[#allocation0]]
  $region34: #{_lambda_.1} parent=0
    _
  %s9 = ssub.s32 1, %s7
  %s10 = scalar_select 0, %s9, %s7
  $region1: #{_lambda_.1} parent=0
    #allocation2 [shape = 'u8[1024]{0}', space=vmem, size = 0x400, scoped, tag = 'output window, operand 0, single buffered']
    #allocation3 [shape = 's32[1]{0}', space=sflag, size = 0x4, scoped, tag = 'scoped memory for _lambda_.1']
    %11 = vsyncpa [#allocation3], 0
    // Predicated region
    $region2: #{_lambda_.1} parent=1 // pred_check
      _
    $region3: #{_lambda_.1} parent=1 // pred_check_branch
      %13 = sbr.rel (0) target = $region5
    $region4: #{_lambda_.1} parent=1 // pred_region
      _
    $region5: #{_lambda_.1} parent=1 // pred_fallthru
      _
    // Predicated region
    $region6: #{_lambda_.1} parent=1 // pred_check
      _
    $region7: #{_lambda_.1} parent=1 // pred_check_branch
      %15 = sbr.rel (0) target = $region9
    $region8: #{_lambda_.1} parent=1 // pred_region
      _
    $region9: #{_lambda_.1} parent=1 // pred_fallthru
      _
    // Predicated region
    $region10: #{_lambda_.1} parent=1 // pred_check
      _
    $region11: #{_lambda_.1} parent=1 // pred_check_branch
      %17 = sbr.rel (0) target = $region13
    $region12: #{_lambda_.1} parent=1 // pred_region
      _
    $region13: #{_lambda_.1} parent=1 // pred_fallthru
      _
    // Predicated region
    $region14: #{_lambda_.1} parent=1 // pred_check
      _
    $region15: #{_lambda_.1} parent=1 // pred_check_branch
      %19 = sbr.rel (0) target = $region17
    $region16: #{_lambda_.1} parent=1 // pred_region
      _
    $region17: #{_lambda_.1} parent=1 // pred_fallthru
      _
    // Predicated region
    $region18: #{_lambda_.1} parent=1 // pred_check
      _
    $region19: #{_lambda_.1} parent=1 // pred_check_branch
      %21 = sbr.rel (0) target = $region21
    $region20: #{_lambda_.1} parent=1 // pred_region
      _
    $region21: #{_lambda_.1} parent=1 // pred_fallthru
      _
    // Predicated region
    $region22: #{_lambda_.1} parent=1 // pred_check
      _
    $region23: #{_lambda_.1} parent=1 // pred_check_branch
      %23 = sbr.rel (0) target = $region25
    $region24: #{_lambda_.1} parent=1 // pred_region
      _
    $region25: #{_lambda_.1} parent=1 // pred_fallthru
      _
    %v24 = vld [vmem:[%s0] sm:$0xff]
    %v25 = vld [vmem:[%s0 + $0x8] sm:$0xff]
    %v26 = vld [vmem:[%s1] sm:$0xf]
    %v27 = vld [vmem:[%s3] sm:$0x1]
    %v29 = vlaneseq
    %v30 = vshrl.u32 %v29, 7
    %v31 = vsub.s32 0, %v30
    %v32 = vrot.slane %v27, %v31
    %vm34 = vcmask 31744
    %v36 = vsel %vm34, %v24, 0
    %v39 = vsel %vm34, %v25, 0
    %vm41 = vcmask 1043456
    %v43 = vsel %vm41, %v26, 0
    %45 = vmatprep.subr.mxu0 0.0
    %46 = vmatpush1.msra.mxu0 0.0
    %47 = vmatprep.subr.mxu0 0.0
    %48 = vmatpush1.msra.mxu0 0.0
    %49 = vmatprep.subr.mxu0 0.0
    %50 = vmatpush1.msra.mxu0 0.0
    %51 = vmatprep.subr.mxu0 0.0
    %52 = vmatpush1.msra.mxu0 0.0
    %53 = vmatprep.subr.mxu0 0.0
    %54 = vmatpush1.msra.mxu0 0.0
    %55 = vmatprep.subr.mxu0 0.0
    %56 = vmatpush1.msra.mxu0 0.0
    %57 = vmatprep.subr.mxu0 0.0
    %58 = vmatpush1.msra.mxu0 0.0
    %59 = vmatprep.subr.mxu0 0.0
    %60 = vmatpush1.msra.mxu0 0.0
    %61 = vmatprep.subr.mxu0 0.0
    %62 = vmatpush1.msra.mxu0 0.0
    %63 = vmatprep.subr.mxu0 0.0
    %64 = vmatpush1.msra.mxu0 0.0
    %65 = vmatprep.subr.mxu0 0.0
    %66 = vmatpush1.msra.mxu0 0.0
    %67 = vmatprep.subr.mxu0 0.0
    %68 = vmatpush1.msra.mxu0 0.0
    %69 = vmatprep.subr.mxu0 0.0
    %70 = vmatpush1.msra.mxu0 0.0
    %71 = vmatprep.subr.mxu0 0.0
    %72 = vmatpush1.msra.mxu0 0.0
    %73 = vmatprep.subr.mxu0 0.0
    %74 = vmatpush1.msra.mxu0 0.0
    %75 = vmatprep.subr.mxu0 0.0
    %76 = vmatpush1.msra.mxu0 %v43
    %77 = vmatprep.subr.mxu0 0.0
    %78 = vmatpush2.msra.mxu0 0.0
    %79 = vmatprep.subr.mxu0 0.0
    %80 = vmatpush2.msra.mxu0 0.0
    %81 = vmatprep.subr.mxu0 0.0
    %82 = vmatpush2.msra.mxu0 0.0
    %83 = vmatprep.subr.mxu0 0.0
    %84 = vmatpush2.msra.mxu0 0.0
    %85 = vmatprep.subr.mxu0 0.0
    %86 = vmatpush2.msra.mxu0 0.0
    %87 = vmatprep.subr.mxu0 0.0
    %88 = vmatpush2.msra.mxu0 0.0
    %89 = vmatprep.subr.mxu0 0.0
    %90 = vmatpush2.msra.mxu0 0.0
    %91 = vmatprep.subr.mxu0 0.0
    %92 = vmatpush2.msra.mxu0 0.0
    %93 = vmatprep.subr.mxu0 0.0
    %94 = vmatpush2.msra.mxu0 0.0
    %95 = vmatprep.subr.mxu0 0.0
    %96 = vmatpush2.msra.mxu0 0.0
    %97 = vmatprep.subr.mxu0 0.0
    %98 = vmatpush2.msra.mxu0 0.0
    %99 = vmatprep.subr.mxu0 0.0
    %100 = vmatpush2.msra.mxu0 0.0
    %101 = vmatprep.subr.mxu0 0.0
    %102 = vmatpush2.msra.mxu0 0.0
    %103 = vmatprep.subr.mxu0 0.0
    %104 = vmatpush2.msra.mxu0 0.0
    %105 = vmatprep.subr.mxu0 0.0
    %106 = vmatpush2.msra.mxu0 0.0
    %107 = vmatprep.subr.mxu0 0.0
    %108 = vmatpush2.msra.mxu0 0.0
    %109 = vmatprep.mubr.f32.mxu0 0.0
    %110 = vmatmul.mubr.f32.gmra.mxu0 %v36
    %v111 = vpop.f32.mrf.mxu0
    %v112 = vadd.f32 %v32, %v111
    %v113 = vpop.f32.mrf.mxu0
    %114 = vmatprep.mubr.f32.mxu0 0.0
    %115 = vmatmul.mubr.f32.gmra.mxu0 %v39
    %v116 = vpop.f32.mrf.mxu0
    %v117 = vadd.f32 %v32, %v116
    %v118 = vpop.f32.mrf.mxu0
    %119 = vdwg.mxu0
    %v120 = vld [vmem:[%s2] sm:$0xff]
    %v121 = vld [vmem:[%s2 + $0x8] sm:$0xff]
    %v122 = vld [vmem:[%s2 + $0x10] sm:$0xff]
    %v123 = vld [vmem:[%s2 + $0x18] sm:$0xff]
    %v124 = vlaneseq
    %v125 = vand.u32 %v124, 127
    %vm126 = vcmp.ge.s32.totalorder %v125, 64
    %vm127 = vcmp.lt.s32.totalorder %v125, 96
    %vm128 = vmand %vm126, %vm127
    %v129 = vsel %vm128, 1.0, 0.5
    %v130 = vsel %vm128, 0.0, 0.5
    %v131 = vmul.f32 %v112, %v129
    %v132 = vtanh.pop %v131
    %v133 = vmul.f32 %v129, %v132
    %v134 = vadd.f32 %v133, %v130
    %136 = vrot.lane.b32.xlu0 %v134, 64
    %v137 = vpop.permute.xlu0 %136
    %v139 = vmul.f32 %v134, %v137
    %v140 = vtanh.pop %v139
    %142 = vrot.lane.b32.xlu0 %v140, 96
    %v143 = vpop.permute.xlu0 %142
    %v145 = vmul.f32 %v134, %v143
    %147 = vrot.lane.b32.xlu0 %v145, 32
    %v148 = vpop.permute.xlu0 %147
    %vm149 = vcmask 261120
    %v150 = vsel %vm149, %v148, 0
    %152 = vmatprep.subr.mxu0 0.0
    %153 = vmatpush1.msra.mxu0 0.0
    %154 = vmatprep.subr.mxu0 0.0
    %155 = vmatpush1.msra.mxu0 0.0
    %156 = vmatprep.subr.mxu0 0.0
    %157 = vmatpush1.msra.mxu0 0.0
    %158 = vmatprep.subr.mxu0 0.0
    %159 = vmatpush1.msra.mxu0 0.0
    %160 = vmatprep.subr.mxu0 0.0
    %161 = vmatpush1.msra.mxu0 0.0
    %162 = vmatprep.subr.mxu0 0.0
    %163 = vmatpush1.msra.mxu0 0.0
    %164 = vmatprep.subr.mxu0 0.0
    %165 = vmatpush1.msra.mxu0 0.0
    %166 = vmatprep.subr.mxu0 0.0
    %167 = vmatpush1.msra.mxu0 0.0
    %168 = vmatprep.subr.mxu0 0.0
    %169 = vmatpush1.msra.mxu0 0.0
    %170 = vmatprep.subr.mxu0 0.0
    %171 = vmatpush1.msra.mxu0 0.0
    %172 = vmatprep.subr.mxu0 0.0
    %173 = vmatpush1.msra.mxu0 0.0
    %174 = vmatprep.subr.mxu0 0.0
    %175 = vmatpush1.msra.mxu0 0.0
    %176 = vmatprep.subr.mxu0 0.0
    %177 = vmatpush1.msra.mxu0 %v123
    %178 = vmatprep.subr.mxu0 0.0
    %179 = vmatpush1.msra.mxu0 %v122
    %180 = vmatprep.subr.mxu0 0.0
    %181 = vmatpush1.msra.mxu0 %v121
    %182 = vmatprep.subr.mxu0 0.0
    %183 = vmatpush1.msra.mxu0 %v120
    %184 = vmatprep.subr.mxu0 0.0
    %185 = vmatpush2.msra.mxu0 0.0
    %186 = vmatprep.subr.mxu0 0.0
    %187 = vmatpush2.msra.mxu0 0.0
    %188 = vmatprep.subr.mxu0 0.0
    %189 = vmatpush2.msra.mxu0 0.0
    %190 = vmatprep.subr.mxu0 0.0
    %191 = vmatpush2.msra.mxu0 0.0
    %192 = vmatprep.subr.mxu0 0.0
    %193 = vmatpush2.msra.mxu0 0.0
    %194 = vmatprep.subr.mxu0 0.0
    %195 = vmatpush2.msra.mxu0 0.0
    %196 = vmatprep.subr.mxu0 0.0
    %197 = vmatpush2.msra.mxu0 0.0
    %198 = vmatprep.subr.mxu0 0.0
    %199 = vmatpush2.msra.mxu0 0.0
    %200 = vmatprep.subr.mxu0 0.0
    %201 = vmatpush2.msra.mxu0 0.0
    %202 = vmatprep.subr.mxu0 0.0
    %203 = vmatpush2.msra.mxu0 0.0
    %204 = vmatprep.subr.mxu0 0.0
    %205 = vmatpush2.msra.mxu0 0.0
    %206 = vmatprep.subr.mxu0 0.0
    %207 = vmatpush2.msra.mxu0 0.0
    %208 = vmatprep.subr.mxu0 0.0
    %209 = vmatpush2.msra.mxu0 0.0
    %210 = vmatprep.subr.mxu0 0.0
    %211 = vmatpush2.msra.mxu0 0.0
    %212 = vmatprep.subr.mxu0 0.0
    %213 = vmatpush2.msra.mxu0 0.0
    %214 = vmatprep.subr.mxu0 0.0
    %215 = vmatpush2.msra.mxu0 0.0
    %216 = vmatprep.mubr.f32.mxu0 0.0
    %217 = vmatmul.mubr.f32.gmra.mxu0 %v150
    %v218 = vpop.f32.mrf.mxu0
    %v219 = vadd.f32 0.0, %v218
    %v220 = vpop.f32.mrf.mxu0
    %221 = vdwg.mxu0
    %v223 = vrot.slane %v219, 6
    %v225 = vadd.f32 %v112, %v223
    %v226 = vmul.f32 %v225, %v129
    %v227 = vtanh.pop %v226
    %v228 = vmul.f32 %v129, %v227
    %v229 = vadd.f32 %v228, %v130
    %v231 = vrot.slane %v139, 6
    %232 = vrot.lane.b32.xlu0 %v231, 32
    %v233 = vpop.permute.xlu0 %232
    %v235 = vmul.f32 %v229, %v233
    %237 = vrot.lane.b32.xlu0 %v229, 64
    %v238 = vpop.permute.xlu0 %237
    %v240 = vmul.f32 %v229, %v238
    %242 = vrot.lane.b32.xlu0 %v240, 32
    %v243 = vpop.permute.xlu0 %242
    %v245 = vadd.f32 %v235, %v243
    %v246 = vtanh.pop %v245
    %248 = vrot.lane.b32.xlu0 %v246, 64
    %v249 = vpop.permute.xlu0 %248
    %v251 = vmul.f32 %v229, %v249
    %v253 = vrot.slane %v251, 2
    %254 = vrot.lane.b32.xlu0 %v253, 32
    %v255 = vpop.permute.xlu0 %254
    %v256 = vsel %vm149, %v255, 0
    %258 = vmatprep.subr.mxu0 0.0
    %259 = vmatpush1.msra.mxu0 0.0
    %260 = vmatprep.subr.mxu0 0.0
    %261 = vmatpush1.msra.mxu0 0.0
    %262 = vmatprep.subr.mxu0 0.0
    %263 = vmatpush1.msra.mxu0 0.0
    %264 = vmatprep.subr.mxu0 0.0
    %265 = vmatpush1.msra.mxu0 0.0
    %266 = vmatprep.subr.mxu0 0.0
    %267 = vmatpush1.msra.mxu0 0.0
    %268 = vmatprep.subr.mxu0 0.0
    %269 = vmatpush1.msra.mxu0 0.0
    %270 = vmatprep.subr.mxu0 0.0
    %271 = vmatpush1.msra.mxu0 0.0
    %272 = vmatprep.subr.mxu0 0.0
    %273 = vmatpush1.msra.mxu0 0.0
    %274 = vmatprep.subr.mxu0 0.0
    %275 = vmatpush1.msra.mxu0 0.0
    %276 = vmatprep.subr.mxu0 0.0
    %277 = vmatpush1.msra.mxu0 0.0
    %278 = vmatprep.subr.mxu0 0.0
    %279 = vmatpush1.msra.mxu0 0.0
    %280 = vmatprep.subr.mxu0 0.0
    %281 = vmatpush1.msra.mxu0 0.0
    %282 = vmatprep.subr.mxu0 0.0
    %283 = vmatpush1.msra.mxu0 %v123
    %284 = vmatprep.subr.mxu0 0.0
    %285 = vmatpush1.msra.mxu0 %v122
    %286 = vmatprep.subr.mxu0 0.0
    %287 = vmatpush1.msra.mxu0 %v121
    %288 = vmatprep.subr.mxu0 0.0
    %289 = vmatpush1.msra.mxu0 %v120
    %290 = vmatprep.subr.mxu0 0.0
    %291 = vmatpush2.msra.mxu0 0.0
    %292 = vmatprep.subr.mxu0 0.0
    %293 = vmatpush2.msra.mxu0 0.0
    %294 = vmatprep.subr.mxu0 0.0
    %295 = vmatpush2.msra.mxu0 0.0
    %296 = vmatprep.subr.mxu0 0.0
    %297 = vmatpush2.msra.mxu0 0.0
    %298 = vmatprep.subr.mxu0 0.0
    %299 = vmatpush2.msra.mxu0 0.0
    %300 = vmatprep.subr.mxu0 0.0
    %301 = vmatpush2.msra.mxu0 0.0
    %302 = vmatprep.subr.mxu0 0.0
    %303 = vmatpush2.msra.mxu0 0.0
    %304 = vmatprep.subr.mxu0 0.0
    %305 = vmatpush2.msra.mxu0 0.0
    %306 = vmatprep.subr.mxu0 0.0
    %307 = vmatpush2.msra.mxu0 0.0
    %308 = vmatprep.subr.mxu0 0.0
    %309 = vmatpush2.msra.mxu0 0.0
    %310 = vmatprep.subr.mxu0 0.0
    %311 = vmatpush2.msra.mxu0 0.0
    %312 = vmatprep.subr.mxu0 0.0
    %313 = vmatpush2.msra.mxu0 0.0
    %314 = vmatprep.subr.mxu0 0.0
    %315 = vmatpush2.msra.mxu0 0.0
    %316 = vmatprep.subr.mxu0 0.0
    %317 = vmatpush2.msra.mxu0 0.0
    %318 = vmatprep.subr.mxu0 0.0
    %319 = vmatpush2.msra.mxu0 0.0
    %320 = vmatprep.subr.mxu0 0.0
    %321 = vmatpush2.msra.mxu0 0.0
    %322 = vmatprep.mubr.f32.mxu0 0.0
    %323 = vmatmul.mubr.f32.gmra.mxu0 %v256
    %v324 = vpop.f32.mrf.mxu0
    %v325 = vadd.f32 0.0, %v324
    %v326 = vpop.f32.mrf.mxu0
    %327 = vdwg.mxu0
    %v329 = vrot.slane %v325, 4
    %v331 = vadd.f32 %v112, %v329
    %v332 = vmul.f32 %v331, %v129
    %v333 = vtanh.pop %v332
    %v334 = vmul.f32 %v129, %v333
    %v335 = vadd.f32 %v334, %v130
    %v337 = vrot.slane %v245, 6
    %v339 = vmul.f32 %v335, %v337
    %341 = vrot.lane.b32.xlu0 %v335, 64
    %v342 = vpop.permute.xlu0 %341
    %v344 = vmul.f32 %v335, %v342
    %346 = vrot.lane.b32.xlu0 %v344, 32
    %v347 = vpop.permute.xlu0 %346
    %v349 = vadd.f32 %v339, %v347
    %v350 = vtanh.pop %v349
    %352 = vrot.lane.b32.xlu0 %v350, 64
    %v353 = vpop.permute.xlu0 %352
    %v355 = vmul.f32 %v335, %v353
    %v357 = vrot.slane %v355, 4
    %358 = vrot.lane.b32.xlu0 %v357, 32
    %v359 = vpop.permute.xlu0 %358
    %v360 = vsel %vm149, %v359, 0
    %362 = vmatprep.subr.mxu0 0.0
    %363 = vmatpush1.msra.mxu0 0.0
    %364 = vmatprep.subr.mxu0 0.0
    %365 = vmatpush1.msra.mxu0 0.0
    %366 = vmatprep.subr.mxu0 0.0
    %367 = vmatpush1.msra.mxu0 0.0
    %368 = vmatprep.subr.mxu0 0.0
    %369 = vmatpush1.msra.mxu0 0.0
    %370 = vmatprep.subr.mxu0 0.0
    %371 = vmatpush1.msra.mxu0 0.0
    %372 = vmatprep.subr.mxu0 0.0
    %373 = vmatpush1.msra.mxu0 0.0
    %374 = vmatprep.subr.mxu0 0.0
    %375 = vmatpush1.msra.mxu0 0.0
    %376 = vmatprep.subr.mxu0 0.0
    %377 = vmatpush1.msra.mxu0 0.0
    %378 = vmatprep.subr.mxu0 0.0
    %379 = vmatpush1.msra.mxu0 0.0
    %380 = vmatprep.subr.mxu0 0.0
    %381 = vmatpush1.msra.mxu0 0.0
    %382 = vmatprep.subr.mxu0 0.0
    %383 = vmatpush1.msra.mxu0 0.0
    %384 = vmatprep.subr.mxu0 0.0
    %385 = vmatpush1.msra.mxu0 0.0
    %386 = vmatprep.subr.mxu0 0.0
    %387 = vmatpush1.msra.mxu0 %v123
    %388 = vmatprep.subr.mxu0 0.0
    %389 = vmatpush1.msra.mxu0 %v122
    %390 = vmatprep.subr.mxu0 0.0
    %391 = vmatpush1.msra.mxu0 %v121
    %392 = vmatprep.subr.mxu0 0.0
    %393 = vmatpush1.msra.mxu0 %v120
    %394 = vmatprep.subr.mxu0 0.0
    %395 = vmatpush2.msra.mxu0 0.0
    %396 = vmatprep.subr.mxu0 0.0
    %397 = vmatpush2.msra.mxu0 0.0
    %398 = vmatprep.subr.mxu0 0.0
    %399 = vmatpush2.msra.mxu0 0.0
    %400 = vmatprep.subr.mxu0 0.0
    %401 = vmatpush2.msra.mxu0 0.0
    %402 = vmatprep.subr.mxu0 0.0
    %403 = vmatpush2.msra.mxu0 0.0
    %404 = vmatprep.subr.mxu0 0.0
    %405 = vmatpush2.msra.mxu0 0.0
    %406 = vmatprep.subr.mxu0 0.0
    %407 = vmatpush2.msra.mxu0 0.0
    %408 = vmatprep.subr.mxu0 0.0
    %409 = vmatpush2.msra.mxu0 0.0
    %410 = vmatprep.subr.mxu0 0.0
    %411 = vmatpush2.msra.mxu0 0.0
    %412 = vmatprep.subr.mxu0 0.0
    %413 = vmatpush2.msra.mxu0 0.0
    %414 = vmatprep.subr.mxu0 0.0
    %415 = vmatpush2.msra.mxu0 0.0
    %416 = vmatprep.subr.mxu0 0.0
    %417 = vmatpush2.msra.mxu0 0.0
    %418 = vmatprep.subr.mxu0 0.0
    %419 = vmatpush2.msra.mxu0 0.0
    %420 = vmatprep.subr.mxu0 0.0
    %421 = vmatpush2.msra.mxu0 0.0
    %422 = vmatprep.subr.mxu0 0.0
    %423 = vmatpush2.msra.mxu0 0.0
    %424 = vmatprep.subr.mxu0 0.0
    %425 = vmatpush2.msra.mxu0 0.0
    %426 = vmatprep.mubr.f32.mxu0 0.0
    %427 = vmatmul.mubr.f32.gmra.mxu0 %v360
    %v428 = vpop.f32.mrf.mxu0
    %v429 = vadd.f32 0.0, %v428
    %v430 = vpop.f32.mrf.mxu0
    %431 = vdwg.mxu0
    %v433 = vrot.slane %v429, 2
    %v435 = vadd.f32 %v112, %v433
    %v436 = vmul.f32 %v435, %v129
    %v437 = vtanh.pop %v436
    %v438 = vmul.f32 %v129, %v437
    %v439 = vadd.f32 %v438, %v130
    %v441 = vrot.slane %v349, 6
    %v443 = vmul.f32 %v439, %v441
    %445 = vrot.lane.b32.xlu0 %v439, 64
    %v446 = vpop.permute.xlu0 %445
    %v448 = vmul.f32 %v439, %v446
    %450 = vrot.lane.b32.xlu0 %v448, 32
    %v451 = vpop.permute.xlu0 %450
    %v453 = vadd.f32 %v443, %v451
    %v454 = vtanh.pop %v453
    %456 = vrot.lane.b32.xlu0 %v454, 64
    %v457 = vpop.permute.xlu0 %456
    %v459 = vmul.f32 %v439, %v457
    %v461 = vrot.slane %v459, 6
    %462 = vrot.lane.b32.xlu0 %v461, 32
    %v463 = vpop.permute.xlu0 %462
    %v464 = vsel %vm149, %v463, 0
    %466 = vmatprep.subr.mxu0 0.0
    %467 = vmatpush1.msra.mxu0 0.0
    %468 = vmatprep.subr.mxu0 0.0
    %469 = vmatpush1.msra.mxu0 0.0
    %470 = vmatprep.subr.mxu0 0.0
    %471 = vmatpush1.msra.mxu0 0.0
    %472 = vmatprep.subr.mxu0 0.0
    %473 = vmatpush1.msra.mxu0 0.0
    %474 = vmatprep.subr.mxu0 0.0
    %475 = vmatpush1.msra.mxu0 0.0
    %476 = vmatprep.subr.mxu0 0.0
    %477 = vmatpush1.msra.mxu0 0.0
    %478 = vmatprep.subr.mxu0 0.0
    %479 = vmatpush1.msra.mxu0 0.0
    %480 = vmatprep.subr.mxu0 0.0
    %481 = vmatpush1.msra.mxu0 0.0
    %482 = vmatprep.subr.mxu0 0.0
    %483 = vmatpush1.msra.mxu0 0.0
    %484 = vmatprep.subr.mxu0 0.0
    %485 = vmatpush1.msra.mxu0 0.0
    %486 = vmatprep.subr.mxu0 0.0
    %487 = vmatpush1.msra.mxu0 0.0
    %488 = vmatprep.subr.mxu0 0.0
    %489 = vmatpush1.msra.mxu0 0.0
    %490 = vmatprep.subr.mxu0 0.0
    %491 = vmatpush1.msra.mxu0 %v123
    %492 = vmatprep.subr.mxu0 0.0
    %493 = vmatpush1.msra.mxu0 %v122
    %494 = vmatprep.subr.mxu0 0.0
    %495 = vmatpush1.msra.mxu0 %v121
    %496 = vmatprep.subr.mxu0 0.0
    %497 = vmatpush1.msra.mxu0 %v120
    %498 = vmatprep.subr.mxu0 0.0
    %499 = vmatpush2.msra.mxu0 0.0
    %500 = vmatprep.subr.mxu0 0.0
    %501 = vmatpush2.msra.mxu0 0.0
    %502 = vmatprep.subr.mxu0 0.0
    %503 = vmatpush2.msra.mxu0 0.0
    %504 = vmatprep.subr.mxu0 0.0
    %505 = vmatpush2.msra.mxu0 0.0
    %506 = vmatprep.subr.mxu0 0.0
    %507 = vmatpush2.msra.mxu0 0.0
    %508 = vmatprep.subr.mxu0 0.0
    %509 = vmatpush2.msra.mxu0 0.0
    %510 = vmatprep.subr.mxu0 0.0
    %511 = vmatpush2.msra.mxu0 0.0
    %512 = vmatprep.subr.mxu0 0.0
    %513 = vmatpush2.msra.mxu0 0.0
    %514 = vmatprep.subr.mxu0 0.0
    %515 = vmatpush2.msra.mxu0 0.0
    %516 = vmatprep.subr.mxu0 0.0
    %517 = vmatpush2.msra.mxu0 0.0
    %518 = vmatprep.subr.mxu0 0.0
    %519 = vmatpush2.msra.mxu0 0.0
    %520 = vmatprep.subr.mxu0 0.0
    %521 = vmatpush2.msra.mxu0 0.0
    %522 = vmatprep.subr.mxu0 0.0
    %523 = vmatpush2.msra.mxu0 0.0
    %524 = vmatprep.subr.mxu0 0.0
    %525 = vmatpush2.msra.mxu0 0.0
    %526 = vmatprep.subr.mxu0 0.0
    %527 = vmatpush2.msra.mxu0 0.0
    %528 = vmatprep.subr.mxu0 0.0
    %529 = vmatpush2.msra.mxu0 0.0
    %530 = vmatprep.mubr.f32.mxu0 0.0
    %531 = vmatmul.mubr.f32.gmra.mxu0 %v464
    %v532 = vpop.f32.mrf.mxu0
    %v533 = vadd.f32 0.0, %v532
    %v534 = vpop.f32.mrf.mxu0
    %535 = vdwg.mxu0
    %v536 = vadd.f32 %v117, %v533
    %v537 = vmul.f32 %v536, %v129
    %v538 = vtanh.pop %v537
    %v539 = vmul.f32 %v129, %v538
    %v540 = vadd.f32 %v539, %v130
    %v542 = vrot.slane %v453, 6
    %v544 = vmul.f32 %v540, %v542
    %546 = vrot.lane.b32.xlu0 %v540, 64
    %v547 = vpop.permute.xlu0 %546
    %v549 = vmul.f32 %v540, %v547
    %551 = vrot.lane.b32.xlu0 %v549, 32
    %v552 = vpop.permute.xlu0 %551
    %v554 = vadd.f32 %v544, %v552
    %v555 = vtanh.pop %v554
    %557 = vrot.lane.b32.xlu0 %v555, 64
    %v558 = vpop.permute.xlu0 %557
    %v560 = vmul.f32 %v540, %v558
    %562 = vrot.lane.b32.xlu0 %v560, 32
    %v563 = vpop.permute.xlu0 %562
    %v564 = vsel %vm149, %v563, 0
    %566 = vmatprep.subr.mxu0 0.0
    %567 = vmatpush1.msra.mxu0 0.0
    %568 = vmatprep.subr.mxu0 0.0
    %569 = vmatpush1.msra.mxu0 0.0
    %570 = vmatprep.subr.mxu0 0.0
    %571 = vmatpush1.msra.mxu0 0.0
    %572 = vmatprep.subr.mxu0 0.0
    %573 = vmatpush1.msra.mxu0 0.0
    %574 = vmatprep.subr.mxu0 0.0
    %575 = vmatpush1.msra.mxu0 0.0
    %576 = vmatprep.subr.mxu0 0.0
    %577 = vmatpush1.msra.mxu0 0.0
    %578 = vmatprep.subr.mxu0 0.0
    %579 = vmatpush1.msra.mxu0 0.0
    %580 = vmatprep.subr.mxu0 0.0
    %581 = vmatpush1.msra.mxu0 0.0
    %582 = vmatprep.subr.mxu0 0.0
    %583 = vmatpush1.msra.mxu0 0.0
    %584 = vmatprep.subr.mxu0 0.0
    %585 = vmatpush1.msra.mxu0 0.0
    %586 = vmatprep.subr.mxu0 0.0
    %587 = vmatpush1.msra.mxu0 0.0
    %588 = vmatprep.subr.mxu0 0.0
    %589 = vmatpush1.msra.mxu0 0.0
    %590 = vmatprep.subr.mxu0 0.0
    %591 = vmatpush1.msra.mxu0 %v123
    %592 = vmatprep.subr.mxu0 0.0
    %593 = vmatpush1.msra.mxu0 %v122
    %594 = vmatprep.subr.mxu0 0.0
    %595 = vmatpush1.msra.mxu0 %v121
    %596 = vmatprep.subr.mxu0 0.0
    %597 = vmatpush1.msra.mxu0 %v120
    %598 = vmatprep.subr.mxu0 0.0
    %599 = vmatpush2.msra.mxu0 0.0
    %600 = vmatprep.subr.mxu0 0.0
    %601 = vmatpush2.msra.mxu0 0.0
    %602 = vmatprep.subr.mxu0 0.0
    %603 = vmatpush2.msra.mxu0 0.0
    %604 = vmatprep.subr.mxu0 0.0
    %605 = vmatpush2.msra.mxu0 0.0
    %606 = vmatprep.subr.mxu0 0.0
    %607 = vmatpush2.msra.mxu0 0.0
    %608 = vmatprep.subr.mxu0 0.0
    %609 = vmatpush2.msra.mxu0 0.0
    %610 = vmatprep.subr.mxu0 0.0
    %611 = vmatpush2.msra.mxu0 0.0
    %612 = vmatprep.subr.mxu0 0.0
    %613 = vmatpush2.msra.mxu0 0.0
    %614 = vmatprep.subr.mxu0 0.0
    %615 = vmatpush2.msra.mxu0 0.0
    %616 = vmatprep.subr.mxu0 0.0
    %617 = vmatpush2.msra.mxu0 0.0
    %618 = vmatprep.subr.mxu0 0.0
    %619 = vmatpush2.msra.mxu0 0.0
    %620 = vmatprep.subr.mxu0 0.0
    %621 = vmatpush2.msra.mxu0 0.0
    %622 = vmatprep.subr.mxu0 0.0
    %623 = vmatpush2.msra.mxu0 0.0
    %624 = vmatprep.subr.mxu0 0.0
    %625 = vmatpush2.msra.mxu0 0.0
    %626 = vmatprep.subr.mxu0 0.0
    %627 = vmatpush2.msra.mxu0 0.0
    %628 = vmatprep.subr.mxu0 0.0
    %629 = vmatpush2.msra.mxu0 0.0
    %630 = vmatprep.mubr.f32.mxu0 0.0
    %631 = vmatmul.mubr.f32.gmra.mxu0 %v564
    %v632 = vpop.f32.mrf.mxu0
    %v633 = vadd.f32 0.0, %v632
    %v634 = vpop.f32.mrf.mxu0
    %635 = vdwg.mxu0
    %v637 = vrot.slane %v633, 6
    %v639 = vadd.f32 %v117, %v637
    %v640 = vmul.f32 %v639, %v129
    %v641 = vtanh.pop %v640
    %v642 = vmul.f32 %v129, %v641
    %v643 = vadd.f32 %v642, %v130
    %v645 = vrot.slane %v554, 6
    %v647 = vmul.f32 %v643, %v645
    %649 = vrot.lane.b32.xlu0 %v643, 64
    %v650 = vpop.permute.xlu0 %649
    %v652 = vmul.f32 %v643, %v650
    %654 = vrot.lane.b32.xlu0 %v652, 32
    %v655 = vpop.permute.xlu0 %654
    %v657 = vadd.f32 %v647, %v655
    %v658 = vtanh.pop %v657
    %660 = vrot.lane.b32.xlu0 %v658, 64
    %v661 = vpop.permute.xlu0 %660
    %v663 = vmul.f32 %v643, %v661
    %v665 = vrot.slane %v663, 2
    %666 = vrot.lane.b32.xlu0 %v665, 32
    %v667 = vpop.permute.xlu0 %666
    %v668 = vsel %vm149, %v667, 0
    %670 = vmatprep.subr.mxu0 0.0
    %671 = vmatpush1.msra.mxu0 0.0
    %672 = vmatprep.subr.mxu0 0.0
    %673 = vmatpush1.msra.mxu0 0.0
    %674 = vmatprep.subr.mxu0 0.0
    %675 = vmatpush1.msra.mxu0 0.0
    %676 = vmatprep.subr.mxu0 0.0
    %677 = vmatpush1.msra.mxu0 0.0
    %678 = vmatprep.subr.mxu0 0.0
    %679 = vmatpush1.msra.mxu0 0.0
    %680 = vmatprep.subr.mxu0 0.0
    %681 = vmatpush1.msra.mxu0 0.0
    %682 = vmatprep.subr.mxu0 0.0
    %683 = vmatpush1.msra.mxu0 0.0
    %684 = vmatprep.subr.mxu0 0.0
    %685 = vmatpush1.msra.mxu0 0.0
    %686 = vmatprep.subr.mxu0 0.0
    %687 = vmatpush1.msra.mxu0 0.0
    %688 = vmatprep.subr.mxu0 0.0
    %689 = vmatpush1.msra.mxu0 0.0
    %690 = vmatprep.subr.mxu0 0.0
    %691 = vmatpush1.msra.mxu0 0.0
    %692 = vmatprep.subr.mxu0 0.0
    %693 = vmatpush1.msra.mxu0 0.0
    %694 = vmatprep.subr.mxu0 0.0
    %695 = vmatpush1.msra.mxu0 %v123
    %696 = vmatprep.subr.mxu0 0.0
    %697 = vmatpush1.msra.mxu0 %v122
    %698 = vmatprep.subr.mxu0 0.0
    %699 = vmatpush1.msra.mxu0 %v121
    %700 = vmatprep.subr.mxu0 0.0
    %701 = vmatpush1.msra.mxu0 %v120
    %702 = vmatprep.subr.mxu0 0.0
    %703 = vmatpush2.msra.mxu0 0.0
    %704 = vmatprep.subr.mxu0 0.0
    %705 = vmatpush2.msra.mxu0 0.0
    %706 = vmatprep.subr.mxu0 0.0
    %707 = vmatpush2.msra.mxu0 0.0
    %708 = vmatprep.subr.mxu0 0.0
    %709 = vmatpush2.msra.mxu0 0.0
    %710 = vmatprep.subr.mxu0 0.0
    %711 = vmatpush2.msra.mxu0 0.0
    %712 = vmatprep.subr.mxu0 0.0
    %713 = vmatpush2.msra.mxu0 0.0
    %714 = vmatprep.subr.mxu0 0.0
    %715 = vmatpush2.msra.mxu0 0.0
    %716 = vmatprep.subr.mxu0 0.0
    %717 = vmatpush2.msra.mxu0 0.0
    %718 = vmatprep.subr.mxu0 0.0
    %719 = vmatpush2.msra.mxu0 0.0
    %720 = vmatprep.subr.mxu0 0.0
    %721 = vmatpush2.msra.mxu0 0.0
    %722 = vmatprep.subr.mxu0 0.0
    %723 = vmatpush2.msra.mxu0 0.0
    %724 = vmatprep.subr.mxu0 0.0
    %725 = vmatpush2.msra.mxu0 0.0
    %726 = vmatprep.subr.mxu0 0.0
    %727 = vmatpush2.msra.mxu0 0.0
    %728 = vmatprep.subr.mxu0 0.0
    %729 = vmatpush2.msra.mxu0 0.0
    %730 = vmatprep.subr.mxu0 0.0
    %731 = vmatpush2.msra.mxu0 0.0
    %732 = vmatprep.subr.mxu0 0.0
    %733 = vmatpush2.msra.mxu0 0.0
    %734 = vmatprep.mubr.f32.mxu0 0.0
    %735 = vmatmul.mubr.f32.gmra.mxu0 %v668
    %v736 = vpop.f32.mrf.mxu0
    %v737 = vadd.f32 0.0, %v736
    %v738 = vpop.f32.mrf.mxu0
    %739 = vdwg.mxu0
    %v741 = vrot.slane %v737, 4
    %v743 = vadd.f32 %v117, %v741
    %v744 = vmul.f32 %v743, %v129
    %v745 = vtanh.pop %v744
    %v746 = vmul.f32 %v129, %v745
    %v747 = vadd.f32 %v746, %v130
    %v749 = vrot.slane %v657, 6
    %v751 = vmul.f32 %v747, %v749
    %753 = vrot.lane.b32.xlu0 %v747, 64
    %v754 = vpop.permute.xlu0 %753
    %v756 = vmul.f32 %v747, %v754
    %758 = vrot.lane.b32.xlu0 %v756, 32
    %v759 = vpop.permute.xlu0 %758
    %v761 = vadd.f32 %v751, %v759
    %v762 = vtanh.pop %v761
    %764 = vrot.lane.b32.xlu0 %v762, 64
    %v765 = vpop.permute.xlu0 %764
    %v767 = vmul.f32 %v747, %v765
    %v769 = vrot.slane %v767, 4
    %770 = vrot.lane.b32.xlu0 %v769, 32
    %v771 = vpop.permute.xlu0 %770
    %v772 = vsel %vm149, %v771, 0
    %774 = vmatprep.subr.mxu0 0.0
    %775 = vmatpush1.msra.mxu0 0.0
    %776 = vmatprep.subr.mxu0 0.0
    %777 = vmatpush1.msra.mxu0 0.0
    %778 = vmatprep.subr.mxu0 0.0
    %779 = vmatpush1.msra.mxu0 0.0
    %780 = vmatprep.subr.mxu0 0.0
    %781 = vmatpush1.msra.mxu0 0.0
    %782 = vmatprep.subr.mxu0 0.0
    %783 = vmatpush1.msra.mxu0 0.0
    %784 = vmatprep.subr.mxu0 0.0
    %785 = vmatpush1.msra.mxu0 0.0
    %786 = vmatprep.subr.mxu0 0.0
    %787 = vmatpush1.msra.mxu0 0.0
    %788 = vmatprep.subr.mxu0 0.0
    %789 = vmatpush1.msra.mxu0 0.0
    %790 = vmatprep.subr.mxu0 0.0
    %791 = vmatpush1.msra.mxu0 0.0
    %792 = vmatprep.subr.mxu0 0.0
    %793 = vmatpush1.msra.mxu0 0.0
    %794 = vmatprep.subr.mxu0 0.0
    %795 = vmatpush1.msra.mxu0 0.0
    %796 = vmatprep.subr.mxu0 0.0
    %797 = vmatpush1.msra.mxu0 0.0
    %798 = vmatprep.subr.mxu0 0.0
    %799 = vmatpush1.msra.mxu0 %v123
    %800 = vmatprep.subr.mxu0 0.0
    %801 = vmatpush1.msra.mxu0 %v122
    %802 = vmatprep.subr.mxu0 0.0
    %803 = vmatpush1.msra.mxu0 %v121
    %804 = vmatprep.subr.mxu0 0.0
    %805 = vmatpush1.msra.mxu0 %v120
    %806 = vmatprep.subr.mxu0 0.0
    %807 = vmatpush2.msra.mxu0 0.0
    %808 = vmatprep.subr.mxu0 0.0
    %809 = vmatpush2.msra.mxu0 0.0
    %810 = vmatprep.subr.mxu0 0.0
    %811 = vmatpush2.msra.mxu0 0.0
    %812 = vmatprep.subr.mxu0 0.0
    %813 = vmatpush2.msra.mxu0 0.0
    %814 = vmatprep.subr.mxu0 0.0
    %815 = vmatpush2.msra.mxu0 0.0
    %816 = vmatprep.subr.mxu0 0.0
    %817 = vmatpush2.msra.mxu0 0.0
    %818 = vmatprep.subr.mxu0 0.0
    %819 = vmatpush2.msra.mxu0 0.0
    %820 = vmatprep.subr.mxu0 0.0
    %821 = vmatpush2.msra.mxu0 0.0
    %822 = vmatprep.subr.mxu0 0.0
    %823 = vmatpush2.msra.mxu0 0.0
    %824 = vmatprep.subr.mxu0 0.0
    %825 = vmatpush2.msra.mxu0 0.0
    %826 = vmatprep.subr.mxu0 0.0
    %827 = vmatpush2.msra.mxu0 0.0
    %828 = vmatprep.subr.mxu0 0.0
    %829 = vmatpush2.msra.mxu0 0.0
    %830 = vmatprep.subr.mxu0 0.0
    %831 = vmatpush2.msra.mxu0 0.0
    %832 = vmatprep.subr.mxu0 0.0
    %833 = vmatpush2.msra.mxu0 0.0
    %834 = vmatprep.subr.mxu0 0.0
    %835 = vmatpush2.msra.mxu0 0.0
    %836 = vmatprep.subr.mxu0 0.0
    %837 = vmatpush2.msra.mxu0 0.0
    %838 = vmatprep.mubr.f32.mxu0 0.0
    %839 = vmatmul.mubr.f32.gmra.mxu0 %v772
    %v840 = vpop.f32.mrf.mxu0
    %v841 = vadd.f32 0.0, %v840
    %v842 = vpop.f32.mrf.mxu0
    %843 = vdwg.mxu0
    %v845 = vrot.slane %v841, 2
    %v847 = vadd.f32 %v117, %v845
    %v848 = vmul.f32 %v847, %v129
    %v849 = vtanh.pop %v848
    %v850 = vmul.f32 %v129, %v849
    %v851 = vadd.f32 %v850, %v130
    %v853 = vrot.slane %v761, 6
    %v855 = vmul.f32 %v851, %v853
    %857 = vrot.lane.b32.xlu0 %v851, 64
    %v858 = vpop.permute.xlu0 %857
    %v860 = vmul.f32 %v851, %v858
    %862 = vrot.lane.b32.xlu0 %v860, 32
    %v863 = vpop.permute.xlu0 %862
    %v865 = vadd.f32 %v855, %v863
    %v866 = vtanh.pop %v865
    %868 = vrot.lane.b32.xlu0 %v866, 64
    %v869 = vpop.permute.xlu0 %868
    %v871 = vmul.f32 %v851, %v869
    %v872 = vld [vmem:[%s4] sm:$0xff]
    %v873 = vld [vmem:[%s4 + $0x8] sm:$0xff]
    %v874 = vld [vmem:[%s4 + $0x10] sm:$0xff]
    %v875 = vld [vmem:[%s4 + $0x18] sm:$0xff]
    %v876 = vld [vmem:[%s5] sm:$0x1]
    %v878 = vlaneseq
    %v879 = vshrl.u32 %v878, 7
    %v880 = vsub.s32 0, %v879
    %v881 = vrot.slane %v876, %v880
    %v884 = vrot.slane %v871, 6
    %885 = vrot.lane.b32.xlu0 %v884, 32
    %v886 = vpop.permute.xlu0 %885
    %v887 = vsel %vm149, %v886, 0
    %889 = vmatprep.subr.mxu0 0.0
    %890 = vmatpush1.msra.mxu0 0.0
    %891 = vmatprep.subr.mxu0 0.0
    %892 = vmatpush1.msra.mxu0 0.0
    %893 = vmatprep.subr.mxu0 0.0
    %894 = vmatpush1.msra.mxu0 0.0
    %895 = vmatprep.subr.mxu0 0.0
    %896 = vmatpush1.msra.mxu0 0.0
    %897 = vmatprep.subr.mxu0 0.0
    %898 = vmatpush1.msra.mxu0 0.0
    %899 = vmatprep.subr.mxu0 0.0
    %900 = vmatpush1.msra.mxu0 0.0
    %901 = vmatprep.subr.mxu0 0.0
    %902 = vmatpush1.msra.mxu0 0.0
    %903 = vmatprep.subr.mxu0 0.0
    %904 = vmatpush1.msra.mxu0 0.0
    %905 = vmatprep.subr.mxu0 0.0
    %906 = vmatpush1.msra.mxu0 0.0
    %907 = vmatprep.subr.mxu0 0.0
    %908 = vmatpush1.msra.mxu0 0.0
    %909 = vmatprep.subr.mxu0 0.0
    %910 = vmatpush1.msra.mxu0 0.0
    %911 = vmatprep.subr.mxu0 0.0
    %912 = vmatpush1.msra.mxu0 0.0
    %913 = vmatprep.subr.mxu0 0.0
    %914 = vmatpush1.msra.mxu0 %v875
    %915 = vmatprep.subr.mxu0 0.0
    %916 = vmatpush1.msra.mxu0 %v874
    %917 = vmatprep.subr.mxu0 0.0
    %918 = vmatpush1.msra.mxu0 %v873
    %919 = vmatprep.subr.mxu0 0.0
    %920 = vmatpush1.msra.mxu0 %v872
    %921 = vmatprep.subr.mxu0 0.0
    %922 = vmatpush2.msra.mxu0 0.0
    %923 = vmatprep.subr.mxu0 0.0
    %924 = vmatpush2.msra.mxu0 0.0
    %925 = vmatprep.subr.mxu0 0.0
    %926 = vmatpush2.msra.mxu0 0.0
    %927 = vmatprep.subr.mxu0 0.0
    %928 = vmatpush2.msra.mxu0 0.0
    %929 = vmatprep.subr.mxu0 0.0
    %930 = vmatpush2.msra.mxu0 0.0
    %931 = vmatprep.subr.mxu0 0.0
    %932 = vmatpush2.msra.mxu0 0.0
    %933 = vmatprep.subr.mxu0 0.0
    %934 = vmatpush2.msra.mxu0 0.0
    %935 = vmatprep.subr.mxu0 0.0
    %936 = vmatpush2.msra.mxu0 0.0
    %937 = vmatprep.subr.mxu0 0.0
    %938 = vmatpush2.msra.mxu0 0.0
    %939 = vmatprep.subr.mxu0 0.0
    %940 = vmatpush2.msra.mxu0 0.0
    %941 = vmatprep.subr.mxu0 0.0
    %942 = vmatpush2.msra.mxu0 0.0
    %943 = vmatprep.subr.mxu0 0.0
    %944 = vmatpush2.msra.mxu0 0.0
    %945 = vmatprep.subr.mxu0 0.0
    %946 = vmatpush2.msra.mxu0 0.0
    %947 = vmatprep.subr.mxu0 0.0
    %948 = vmatpush2.msra.mxu0 0.0
    %949 = vmatprep.subr.mxu0 0.0
    %950 = vmatpush2.msra.mxu0 0.0
    %951 = vmatprep.subr.mxu0 0.0
    %952 = vmatpush2.msra.mxu0 0.0
    %953 = vmatprep.mubr.f32.mxu0 0.0
    %954 = vmatmul.mubr.f32.gmra.mxu0 %v887
    %v955 = vpop.f32.mrf.mxu0
    %v956 = vadd.f32 %v881, %v955
    %v957 = vpop.f32.mrf.mxu0
    %958 = vdwg.mxu0
    %vm959 = vcmask 41984
    %960 = vst.msk [vmem:[#allocation2] sm:$0x3] %vm959, %v956
    // Predicated region
    $region26: #{_lambda_.1} parent=1 // pred_check
      _
    $region27: #{_lambda_.1} parent=1 // pred_check_branch
      %962 = sbr.rel (0) target = $region29
    $region28: #{_lambda_.1} parent=1 // pred_region
      %s964 = ssub.s32 32, 32
      %965 = vsyncadd [#allocation3], %s964
      %s967 = sshll.u32 [#allocation2], 4
      %s968 = int_to_ptr.vmem [resolvable:$true] %s967
      %970 = dma.vmem_to_hbm [thread:$0]  %s968, 32, %s6, [#allocation3]
    $region29: #{_lambda_.1} parent=1 // pred_fallthru
      _
    // Predicated region
    $region30: #{_lambda_.1} parent=1 // pred_check
      _
    $region31: #{_lambda_.1} parent=1 // pred_check_branch
      %972 = sbr.rel (0) target = $region33
    $region32: #{_lambda_.1} parent=1 // pred_region
      %973 = dma.done [#allocation3], 32
    $region33: #{_lambda_.1} parent=1 // pred_fallthru
      _
    %974 = vsyncpa [#allocation3], 1

</llo_original>
